<compile_context>
chip_gen: v6e
topology: v6e:2x2x1
jax: 0.10.0
libtpu: 0.0.40
codegen_flags: <defaults>
</compile_context>

<pallas_src>
import functools
import math

import numpy as np

import jax
import jax.numpy as jnp
from jax import lax
from jax.experimental import pallas as pl
from jax.experimental.pallas import tpu as pltpu


# ----------------------------------------------------------------------------
# Pallas kernel: sigmoid class activation + anchor-based bbox decode
# ----------------------------------------------------------------------------
def _postprocess_kernel(cls_ref, loc_ref, anc_ref, scores_ref, boxes_ref, *,
                        batch, approx_sigmoid):
    # cls_ref:    (B*C, tk)  class logits (any float dtype)
    # loc_ref:    (B*4, tk)  rows (per image): dx, dy, dw, dh
    # anc_ref:    (4,   tk)  rows: x1, y1, x2, y2 (shared across batch)
    # scores_ref: (B*C, tk)
    # boxes_ref:  (B*4, tk)  rows (per image): x1, y1, x2, y2 (decoded)

    # ---- class_activation == 'sigmoid' on the full [B*C, tk] block ----------
    logits = cls_ref[...].astype(jnp.float32)
    if approx_sigmoid:
        # EUP exp + approx reciprocal: keeps the divide off the VPU.
        scores = pl.reciprocal(1.0 + jnp.exp(-logits), approx=True)
    else:
        scores = jax.nn.sigmoid(logits)
    scores_ref[...] = scores.astype(scores_ref.dtype)

    # ---- anchor-based decode on the full [B*4, tk] block --------------------
    loc = loc_ref[...].astype(jnp.float32)              # (B*4, tk)
    nrows = loc.shape[0]                                 # B*4 (static)

    anc = anc_ref[...].astype(jnp.float32)               # (4, tk)
    anc_b = jnp.tile(anc, (batch, 1))                    # (B*4, tk)
    # Rows within each group of 4 become [x2, y2, x1, y1]; because anc_b is the
    # same anchors tiled, the cyclic wrap at group boundaries is harmless.
    anc_swap = pltpu.roll(anc_b, shift=2, axis=0)
    size4 = jnp.abs(anc_swap - anc_b) + 1.0              # rows: w, h, w, h  (legacy +1)
    ctr4 = 0.5 * (anc_swap + anc_b)                      # rows: cx, cy, cx, cy

    row = lax.broadcasted_iota(jnp.int32, loc.shape, 0)
    is_xy = (row % 4) < 2                                 # rows 0,1 of each group

    # Gather (dx, dy) and (dw, dh) into every row with two sublane rolls; the
    # mismatched (wrapped) rows are selected away by the mask.
    loc_ctr = jnp.where(is_xy, loc, pltpu.roll(loc, shift=2, axis=0))
    loc_wh = jnp.where(is_xy, pltpu.roll(loc, shift=nrows - 2, axis=0), loc)

    half_sign = jnp.where(is_xy, -0.5, 0.5)
    # rows: [pcx -/+ 0.5*(pw-1), pcy -/+ 0.5*(ph-1)] == [x1, y1, x2, y2]
    boxes = loc_ctr * size4 + ctr4 + half_sign * (jnp.exp(loc_wh) * size4 - 1.0)
    boxes_ref[...] = boxes.astype(boxes_ref.dtype)        # single full-block store


def _choose_tk(k, *, bytes_per_lane, max_tk=2048,
               vmem_budget_bytes=28 * 1024 * 1024):
    """Largest multiple-of-128 tile within the VMEM budget (<= max_tk, <= ceil128(K))."""
    k128 = -(-k // 128) * 128
    cap = max(128, (vmem_budget_bytes // max(bytes_per_lane, 1)) // 128 * 128)
    return int(min(k128, max_tk, cap))


def dac_postprocess_pallas(cls_2d, loc_2d, anchors_t, *,
                           scores_dtype=jnp.bfloat16, boxes_dtype=jnp.float32,
                           max_tk=2048):
    """Fused activation + decode for one level.

    cls_2d:    [B*C, K] class logits (lane-dense K), native dtype
    loc_2d:    [B*4, K] loc offsets (rows dx,dy,dw,dh per image), native dtype
    anchors_t: [4, K]   anchors (x1, y1, x2, y2 rows)
    Returns (scores [B*C, K] scores_dtype, boxes [B*4, K] boxes_dtype).
    """
    BC, K = cls_2d.shape
    B4, K2 = loc_2d.shape
    assert K2 == K and anchors_t.shape == (4, K) and B4 % 4 == 0
    batch = B4 // 4

    # Per-K-lane VMEM footprint per pipeline stage; BlockSpec double-buffers (x2).
    bytes_per_lane = 2 * (BC * cls_2d.dtype.itemsize
                          + B4 * loc_2d.dtype.itemsize
                          + 4 * anchors_t.dtype.itemsize
                          + BC * np.dtype(scores_dtype).itemsize
                          + B4 * np.dtype(boxes_dtype).itemsize)
    tk = _choose_tk(K, bytes_per_lane=bytes_per_lane, max_tk=max_tk)
    grid = (pl.cdiv(K, tk),)   # ragged last block is masked by Pallas; no pad/slice

    kernel = functools.partial(
        _postprocess_kernel, batch=batch,
        approx_sigmoid=np.dtype(scores_dtype).itemsize < 4)

    return pl.pallas_call(
        kernel,
        out_shape=(
            jax.ShapeDtypeStruct((BC, K), scores_dtype),
            jax.ShapeDtypeStruct((B4, K), boxes_dtype),
        ),
        grid_spec=pltpu.PrefetchScalarGridSpec(
            num_scalar_prefetch=0,
            grid=grid,
            in_specs=[
                pl.BlockSpec((BC, tk), lambda k: (0, k)),
                pl.BlockSpec((B4, tk), lambda k: (0, k)),
                pl.BlockSpec((4, tk), lambda k: (0, k)),
            ],
            out_specs=[
                pl.BlockSpec((BC, tk), lambda k: (0, k)),
                pl.BlockSpec((B4, tk), lambda k: (0, k)),
            ],
        ),
        compiler_params=pltpu.CompilerParams(
            dimension_semantics=("parallel",),      # shards K tiles across TCs on v7x
            vmem_limit_bytes=32 * 1024 * 1024),
    )(cls_2d, loc_2d, anchors_t)


# ----------------------------------------------------------------------------
# Glue (plain JAX): NCHW -> lane-dense [B, C, K] and anchor generation
# ----------------------------------------------------------------------------
def nchw_to_lane_dense(p, num_anchors):
    """[B, A*Cp, H, W] -> [B, Cp, H*W*A] with K index = (h*W + w)*A + a.

    Equivalent (up to the final transpose) to permute_preds' [B, K, Cp]."""
    b, ac, h, w = p.shape
    c = ac // num_anchors
    p = p.reshape(b, num_anchors, c, h, w)
    p = jnp.transpose(p, (0, 2, 3, 4, 1))      # [B, Cp, H, W, A]
    return p.reshape(b, c, h * w * num_anchors)


def permute_preds_ref(mlvl_raw_preds, num_anchors):
    """Original layout path ([B, A*C, H, W] -> [B, K, C]); kept for validation."""
    mlvl_preds, mlvl_shapes = [], []
    for cls_p, loc_p in mlvl_raw_preds:
        b, _, h, w = cls_p.shape
        k = num_anchors * h * w

        def _perm(p):
            return jnp.transpose(p, (0, 2, 3, 1)).reshape(b, k, -1)

        mlvl_preds.append((_perm(cls_p), _perm(loc_p)))
        mlvl_shapes.append((h, w, k))
    return mlvl_preds, mlvl_shapes


def make_base_anchors(stride, scales, ratios):
    anchors = []
    for s in scales:
        for r in ratios:
            size = stride * s
            w = size * math.sqrt(1.0 / r)
            h = size * math.sqrt(r)
            cx = (stride - 1.0) / 2.0
            cy = (stride - 1.0) / 2.0
            anchors.append([cx - 0.5 * (w - 1.0), cy - 0.5 * (h - 1.0),
                            cx + 0.5 * (w - 1.0), cy + 0.5 * (h - 1.0)])
    return jnp.asarray(anchors, dtype=jnp.float32)    # (A, 4)


def get_level_anchors_t(h, w, stride, base_anchors):
    """Anchors directly in the transposed (4, H*W*A) layout (K order = h, w, a)."""
    shift_x = jnp.arange(w, dtype=jnp.float32) * stride
    shift_y = jnp.arange(h, dtype=jnp.float32) * stride
    sy, sx = jnp.meshgrid(shift_y, shift_x, indexing="ij")            # (H, W)
    shifts = jnp.stack([sx, sy, sx, sy], axis=0)                      # (4, H, W)
    base_t = base_anchors.T                                           # (4, A)
    anc = shifts[:, :, :, None] + base_t[:, None, None, :]            # (4, H, W, A)
    return anc.reshape(4, -1)                                         # (4, H*W*A)


def dac_det_post_process_eval(mlvl_raw_preds, strides, num_anchors, scales, ratios,
                              *, scores_dtype=jnp.bfloat16, boxes_dtype=jnp.float32):
    """Eval-mode forward: per-level lane-dense repack -> anchors -> fused kernel.

    Returns per-level activated class scores and decoded boxes (the module keeps
    mlvl structure too; the concat only happens inside its predictor/loss)."""
    mlvl_scores, mlvl_boxes, mlvl_anchors = [], [], []
    base_cache = {}
    for (cls_p, loc_p), stride in zip(mlvl_raw_preds, strides):
        b, ac, h, w = cls_p.shape
        c = ac // num_anchors
        k = h * w * num_anchors
        cls2 = nchw_to_lane_dense(cls_p, num_anchors).reshape(b * c, k)   # free reshape
        loc2 = nchw_to_lane_dense(loc_p, num_anchors).reshape(b * 4, k)
        if stride not in base_cache:
            base_cache[stride] = make_base_anchors(stride, scales, ratios)
        anc_t = get_level_anchors_t(h, w, stride, base_cache[stride])     # (4, k) f32
        scores2, boxes2 = dac_postprocess_pallas(
            cls2, loc2, anc_t, scores_dtype=scores_dtype, boxes_dtype=boxes_dtype)
        mlvl_scores.append(scores2.reshape(b, c, k))
        mlvl_boxes.append(boxes2.reshape(b, 4, k))
        mlvl_anchors.append(anc_t)

    # TODO(synk): test_predictor.predict's per-level top-k selection + NMS is
    # data-dependent host logic with no clean Pallas equivalent.
    # TODO(synk): training path (roi_supervisor target assignment + focal/GHM/QFL
    # losses) not implemented in-kernel.
    # TODO(synk): softmax class_activation (with background channel) not implemented;
    # only the sigmoid head is fused.
    # TODO(synk): anchors could be synthesized in-kernel from iota + per-level
    # stride/scale tables (SMEM scalar prefetch) to drop the (4, K) HBM read.
    return {"mlvl_scores": mlvl_scores, "mlvl_boxes": mlvl_boxes,
            "mlvl_anchors": mlvl_anchors}


# ----------------------------------------------------------------------------
# Pure-JAX reference for correctness checking (per level, f32)
# ----------------------------------------------------------------------------
def _reference_level(cls_ck, loc_ck, anchors_t):
    # cls_ck [B, C, K], loc_ck [B, 4, K], anchors_t [4, K]  (all f32)
    scores = jax.nn.sigmoid(cls_ck)
    x1, y1, x2, y2 = anchors_t[0], anchors_t[1], anchors_t[2], anchors_t[3]
    w = x2 - x1 + 1.0
    h = y2 - y1 + 1.0
    cx = x1 + 0.5 * (w - 1.0)
    cy = y1 + 0.5 * (h - 1.0)
    dx, dy, dw, dh = loc_ck[:, 0], loc_ck[:, 1], loc_ck[:, 2], loc_ck[:, 3]
    pcx = dx * w + cx
    pcy = dy * h + cy
    pw = jnp.exp(dw) * w
    ph = jnp.exp(dh) * h
    boxes = jnp.stack([pcx - 0.5 * (pw - 1.0), pcy - 0.5 * (ph - 1.0),
                       pcx + 0.5 * (pw - 1.0), pcy + 0.5 * (ph - 1.0)],
                      axis=1)                                         # [B, 4, K]
    return scores, boxes


if __name__ == "__main__":
    key = jax.random.PRNGKey(0)

    B = 2
    num_classes = 5                    # includes background; sigmoid head uses C = num_classes - 1
    C = num_classes - 1
    scales = [4.0, 5.0]
    ratios = [1.0]
    A = len(scales) * len(ratios)      # num_anchors per location = 2
    strides = [8, 16]
    spatial = [(16, 16), (8, 8)]       # level K = 512 and 128

    # Head outputs in their native (bf16) dtype -- no wrapper-side casts.
    mlvl_raw_preds = []
    for (h, w) in spatial:
        key, k1, k2 = jax.random.split(key, 3)
        cls_p = jax.random.normal(k1, (B, A * C, h, w), jnp.float32).astype(jnp.bfloat16)
        loc_p = (0.1 * jax.random.normal(k2, (B, A * 4, h, w), jnp.float32)).astype(jnp.bfloat16)
        mlvl_raw_preds.append((cls_p, loc_p))

    out = dac_det_post_process_eval(mlvl_raw_preds, strides, A, scales, ratios)
    jax.block_until_ready(out["mlvl_scores"])
    jax.block_until_ready(out["mlvl_boxes"])

    # Validate the lane-dense repack against the original permute_preds layout,
    # and the fused kernel against a pure-JAX f32 reference, per level.
    mlvl_preds_ref, _ = permute_preds_ref(mlvl_raw_preds, A)
    max_s_err = 0.0
    max_b_err = 0.0
    for lvl, ((cls_p, loc_p), stride) in enumerate(zip(mlvl_raw_preds, strides)):
        b, _, h, w = cls_p.shape
        k = h * w * A
        cls_ck = nchw_to_lane_dense(cls_p, A).astype(jnp.float32)          # [B, C, k]
        loc_ck = nchw_to_lane_dense(loc_p, A).astype(jnp.float32)          # [B, 4, k]

        ref_kc = jnp.transpose(mlvl_preds_ref[lvl][0].astype(jnp.float32), (0, 2, 1))
        assert float(jnp.max(jnp.abs(ref_kc - cls_ck))) == 0.0

        ref_scores, ref_boxes = _reference_level(cls_ck, loc_ck, out["mlvl_anchors"][lvl])
        s = out["mlvl_scores"][lvl].astype(jnp.float32)
        bx = out["mlvl_boxes"][lvl].astype(jnp.float32)
        assert s.shape == ref_scores.shape and bx.shape == ref_boxes.shape
        max_s_err = max(max_s_err, float(jnp.max(jnp.abs(s - ref_scores))))
        max_b_err = max(max_b_err, float(jnp.max(jnp.abs(bx - ref_boxes))))
    assert max_s_err < 1e-2, max_s_err      # bf16 score output + approx reciprocal
    assert max_b_err < 1e-2, max_b_err      # f32 box decode

    # Exercise a multi-step grid explicitly (K=512 with tk=256 -> 2 grid steps).
    cls0 = nchw_to_lane_dense(mlvl_raw_preds[0][0], A).reshape(B * C, -1)
    loc0 = nchw_to_lane_dense(mlvl_raw_preds[0][1], A).reshape(B * 4, -1)
    s0, b0 = dac_postprocess_pallas(cls0, loc0, out["mlvl_anchors"][0], max_tk=256)
    s0 = jax.block_until_ready(s0)
    b0 = jax.block_until_ready(b0)
    ref_s0 = out["mlvl_scores"][0].reshape(B * C, -1).astype(jnp.float32)
    ref_b0 = out["mlvl_boxes"][0].reshape(B * 4, -1).astype(jnp.float32)
    assert float(jnp.max(jnp.abs(s0.astype(jnp.float32) - ref_s0))) < 1e-5
    assert float(jnp.max(jnp.abs(b0.astype(jnp.float32) - ref_b0))) < 1e-5

    print("KERNEL_OK")
</pallas_src>

<mosaic_0001>
module attributes {stable_mosaic.version = 11 : i64} {
  func.func @_postprocess_kernel(%arg0: i32, %arg1: memref<8x512xbf16, #tpu.memory_space<vmem>>, %arg2: memref<8x512xbf16, #tpu.memory_space<vmem>>, %arg3: memref<4x512xf32, #tpu.memory_space<vmem>>, %arg4: memref<8x512xbf16, #tpu.memory_space<vmem>>, %arg5: memref<8x512xf32, #tpu.memory_space<vmem>>) attributes {dimension_semantics = [#tpu.dimension_semantics<parallel>], iteration_bounds = array<i64: 1>, scalar_prefetch = 0 : i64, scratch_operands = 0 : i64, tpu.core_type = #tpu.core_type<tc>, window_params = [{transform_indices = @transform_0, window_bounds = array<i64: 8, 512>}, {transform_indices = @transform_1, window_bounds = array<i64: 8, 512>}, {transform_indices = @transform_2, window_bounds = array<i64: 4, 512>}, {transform_indices = @transform_3, window_bounds = array<i64: 8, 512>}, {transform_indices = @transform_4, window_bounds = array<i64: 8, 512>}]} {
    %c0 = arith.constant 0 : index
    %c0_0 = arith.constant 0 : index
    %0 = vector.load %arg1[%c0, %c0_0] : memref<8x512xbf16, #tpu.memory_space<vmem>>, vector<8x512xbf16>
    %1 = arith.extf %0 : vector<8x512xbf16> to vector<8x512xf32>
    %cst = arith.constant 0.000000e+00 : f32
    %2 = vector.broadcast %cst : f32 to vector<8x512xf32>
    %3 = arith.subf %2, %1 : vector<8x512xf32>
    %4 = math.exp %3 : vector<8x512xf32>
    %cst_1 = arith.constant 1.000000e+00 : f32
    %5 = vector.broadcast %cst_1 : f32 to vector<8x512xf32>
    %6 = arith.addf %5, %4 : vector<8x512xf32>
    %7 = tpu.reciprocal %6 {approx = true} : vector<8x512xf32> -> vector<8x512xf32>
    %8 = arith.truncf %7 : vector<8x512xf32> to vector<8x512xbf16>
    %c0_2 = arith.constant 0 : index
    %c0_3 = arith.constant 0 : index
    %9 = vector.load %arg4[%c0_2, %c0_3] : memref<8x512xbf16, #tpu.memory_space<vmem>>, vector<8x512xbf16>
    tpu.vector_store %arg4[%c0_2, %c0_3], %8 {strides = array<i32>} : memref<8x512xbf16, #tpu.memory_space<vmem>>, vector<8x512xbf16>,
    %c0_4 = arith.constant 0 : index
    %c0_5 = arith.constant 0 : index
    %10 = vector.load %arg2[%c0_4, %c0_5] : memref<8x512xbf16, #tpu.memory_space<vmem>>, vector<8x512xbf16>
    %11 = arith.extf %10 : vector<8x512xbf16> to vector<8x512xf32>
    %c0_6 = arith.constant 0 : index
    %c0_7 = arith.constant 0 : index
    %12 = vector.load %arg3[%c0_6, %c0_7] : memref<4x512xf32, #tpu.memory_space<vmem>>, vector<4x512xf32>
    %13 = tpu.concatenate %12, %12 in 0 : vector<4x512xf32>, vector<4x512xf32> -> vector<8x512xf32>
    %c2_i32 = arith.constant 2 : i32
    %14 = tpu.dynamic_rotate %13 by %c2_i32 dim 0 : vector<8x512xf32>, i32 -> vector<8x512xf32>
    %15 = arith.subf %14, %13 : vector<8x512xf32>
    %16 = math.absf %15 : vector<8x512xf32>
    %cst_8 = arith.constant 1.000000e+00 : f32
    %17 = vector.broadcast %cst_8 : f32 to vector<8x512xf32>
    %18 = arith.addf %16, %17 : vector<8x512xf32>
    %19 = arith.addf %14, %13 : vector<8x512xf32>
    %cst_9 = arith.constant 5.000000e-01 : f32
    %20 = vector.broadcast %cst_9 : f32 to vector<8x512xf32>
    %21 = arith.mulf %20, %19 : vector<8x512xf32>
    %22 = tpu.iota {dimensions = array<i32: 0>} : vector<8x512xi32>
    %c4_i32 = arith.constant 4 : i32
    %c0_i32 = arith.constant 0 : i32
    %23 = arith.cmpi eq, %c4_i32, %c0_i32 : i32
    %c1_i32 = arith.constant 1 : i32
    %24 = arith.select %23, %c1_i32, %c4_i32 : i32
    %25 = vector.broadcast %24 : i32 to vector<8x512xi32>
    %26 = arith.remsi %22, %25 : vector<8x512xi32>
    %c0_i32_10 = arith.constant 0 : i32
    %27 = vector.broadcast %c0_i32_10 : i32 to vector<8x512xi32>
    %28 = arith.cmpi ne, %26, %27 : vector<8x512xi32>
    %c0_i32_11 = arith.constant 0 : i32
    %29 = vector.broadcast %c0_i32_11 : i32 to vector<8x512xi32>
    %30 = arith.cmpi slt, %26, %29 : vector<8x512xi32>
    %c0_i32_12 = arith.constant 0 : i32
    %31 = arith.cmpi slt, %24, %c0_i32_12 : i32
    %32 = vector.broadcast %31 : i1 to vector<8x512xi1>
    %33 = vector.broadcast %32 : vector<8x512xi1> to vector<8x512xi1>
    %34 = arith.xori %30, %33 : vector<8x512xi1>
    %35 = arith.andi %34, %28 : vector<8x512xi1>
    %36 = vector.broadcast %24 : i32 to vector<8x512xi32>
    %37 = arith.addi %26, %36 : vector<8x512xi32>
    %38 = arith.select %35, %37, %26 : vector<8x512xi1>, vector<8x512xi32>
    %c2_i32_13 = arith.constant 2 : i32
    %39 = vector.broadcast %c2_i32_13 : i32 to vector<8x512xi32>
    %40 = arith.cmpi slt, %38, %39 : vector<8x512xi32>
    %c2_i32_14 = arith.constant 2 : i32
    %41 = tpu.dynamic_rotate %11 by %c2_i32_14 dim 0 : vector<8x512xf32>, i32 -> vector<8x512xf32>
    %42 = arith.select %40, %11, %41 : vector<8x512xi1>, vector<8x512xf32>
    %c6_i32 = arith.constant 6 : i32
    %43 = tpu.dynamic_rotate %11 by %c6_i32 dim 0 : vector<8x512xf32>, i32 -> vector<8x512xf32>
    %44 = arith.select %40, %43, %11 : vector<8x512xi1>, vector<8x512xf32>
    %cst_15 = arith.constant -5.000000e-01 : f32
    %cst_16 = arith.constant 5.000000e-01 : f32
    %45 = vector.broadcast %cst_15 : f32 to vector<8x512xf32>
    %46 = vector.broadcast %cst_16 : f32 to vector<8x512xf32>
    %47 = arith.select %40, %45, %46 : vector<8x512xi1>, vector<8x512xf32>
    %48 = arith.mulf %42, %18 : vector<8x512xf32>
    %49 = arith.addf %48, %21 : vector<8x512xf32>
    %50 = math.exp %44 : vector<8x512xf32>
    %51 = arith.mulf %50, %18 : vector<8x512xf32>
    %cst_17 = arith.constant 1.000000e+00 : f32
    %52 = vector.broadcast %cst_17 : f32 to vector<8x512xf32>
    %53 = arith.subf %51, %52 : vector<8x512xf32>
    %54 = arith.mulf %47, %53 : vector<8x512xf32>
    %55 = arith.addf %49, %54 : vector<8x512xf32>
    %c0_18 = arith.constant 0 : index
    %c0_19 = arith.constant 0 : index
    %56 = vector.load %arg5[%c0_18, %c0_19] : memref<8x512xf32, #tpu.memory_space<vmem>>, vector<8x512xf32>
    tpu.vector_store %arg5[%c0_18, %c0_19], %55 {strides = array<i32>} : memref<8x512xf32, #tpu.memory_space<vmem>>, vector<8x512xf32>,
    return
  }
  func.func @transform_0(%arg0: i32) -> (i32, i32) {
    %c0_i32 = arith.constant 0 : i32
    %c0_i32_0 = arith.constant 0 : i32
    return %c0_i32, %arg0 : i32, i32
  }
  func.func @transform_1(%arg0: i32) -> (i32, i32) {
    %c0_i32 = arith.constant 0 : i32
    %c0_i32_0 = arith.constant 0 : i32
    return %c0_i32, %arg0 : i32, i32
  }
  func.func @transform_2(%arg0: i32) -> (i32, i32) {
    %c0_i32 = arith.constant 0 : i32
    %c0_i32_0 = arith.constant 0 : i32
    return %c0_i32, %arg0 : i32, i32
  }
  func.func @transform_3(%arg0: i32) -> (i32, i32) {
    %c0_i32 = arith.constant 0 : i32
    %c0_i32_0 = arith.constant 0 : i32
    return %c0_i32, %arg0 : i32, i32
  }
  func.func @transform_4(%arg0: i32) -> (i32, i32) {
    %c0_i32 = arith.constant 0 : i32
    %c0_i32_0 = arith.constant 0 : i32
    return %c0_i32, %arg0 : i32, i32
  }
}

</mosaic_0001>

<llo_original>
// kernel: tpu_custom_call.1
$region0: #{tpu_custom_call.1}
  #allocation0 [shape = 'u32[]', space=smem, size = 0x4, offset = 0x4, fixed_abs, tag = 'smem constant byte address 0x4 - core index']
  #allocation1 [shape = 'u32[144,128]{1,0:T(1,128)}', space=vmem, size = 0x12000, scoped, tag = 'internal scratch']
  %s0 = inlined_call_operand.hbm [shape: bf16[8,512], index: 0, kind: input, shape index: {}]
  %s1 = inlined_call_operand.hbm [shape: bf16[8,512], index: 1, kind: input, shape index: {}]
  %s2 = inlined_call_operand.hbm [shape: f32[4,512], index: 2, kind: input, shape index: {}]
  %s3 = inlined_call_operand.hbm [shape: bf16[8,512], index: 3, kind: output, shape index: {0}]
  %s4 = inlined_call_operand.hbm [shape: f32[8,512], index: 4, kind: output, shape index: {1}]
  %5 = xla_tuple %s3, %s4
  %s6 = sld [smem:[#allocation0]]
  $region42: #{tpu_custom_call.1} parent=0
    _
  %s8 = ssub.s32 1, %s6
  %s9 = scalar_select 0, %s8, %s6
  $region1: #{tpu_custom_call.1} parent=0
    #allocation2 [shape = 'u8[8192]{0}', space=vmem, size = 0x2000, scoped, tag = 'input window, operand 0, single buffered']
    #allocation3 [shape = 's32[1]{0}', space=sflag, size = 0x4, scoped, tag = 'scoped memory for tpu_custom_call.1']
    #allocation4 [shape = 's32[1]{0}', space=sflag, size = 0x4, scoped, tag = 'scoped memory for tpu_custom_call.1']
    #allocation5 [shape = 'u8[8192]{0}', space=vmem, size = 0x2000, scoped, tag = 'input window, operand 1, single buffered']
    #allocation6 [shape = 's32[1]{0}', space=sflag, size = 0x4, scoped, tag = 'scoped memory for tpu_custom_call.1']
    #allocation7 [shape = 'u8[8192]{0}', space=vmem, size = 0x2000, scoped, tag = 'input window, operand 2, single buffered']
    #allocation8 [shape = 'u8[8192]{0}', space=vmem, size = 0x2000, scoped, tag = 'output window, operand 0, single buffered']
    #allocation9 [shape = 'u8[16384]{0}', space=vmem, size = 0x4000, scoped, tag = 'output window, operand 1, single buffered']
    #allocation10 [shape = 's32[1]{0}', space=sflag, size = 0x4, scoped, tag = 'scoped memory for tpu_custom_call.1']
    %10 = vsyncpa [#allocation3], 0
    %11 = vsyncpa [#allocation6], 0
    %12 = vsyncpa [#allocation4], 0
    %13 = vsyncpa [#allocation10], 0
    // Predicated region
    $region2: #{tpu_custom_call.1} parent=1 // pred_check
      _
    $region3: #{tpu_custom_call.1} parent=1 // pred_check_branch
      %15 = sbr.rel (0) target = $region5
    $region4: #{tpu_custom_call.1} parent=1 // pred_region
      %s17 = ssub.s32 256, 256
      %18 = vsyncadd [#allocation3], %s17
      %s20 = sshll.u32 [#allocation2], 4
      %s21 = int_to_ptr.vmem [resolvable:$true] %s20
      %23 = dma.hbm_to_vmem [thread:$0]  %s0, 256, %s21, [#allocation3]
    $region5: #{tpu_custom_call.1} parent=1 // pred_fallthru
      _
    // Predicated region
    $region6: #{tpu_custom_call.1} parent=1 // pred_check
      _
    $region7: #{tpu_custom_call.1} parent=1 // pred_check_branch
      %25 = sbr.rel (0) target = $region9
    $region8: #{tpu_custom_call.1} parent=1 // pred_region
      %s27 = ssub.s32 256, 256
      %28 = vsyncadd [#allocation6], %s27
      %s30 = sshll.u32 [#allocation5], 4
      %s31 = int_to_ptr.vmem [resolvable:$true] %s30
      %33 = dma.hbm_to_vmem [thread:$0]  %s1, 256, %s31, [#allocation6]
    $region9: #{tpu_custom_call.1} parent=1 // pred_fallthru
      _
    // Predicated region
    $region10: #{tpu_custom_call.1} parent=1 // pred_check
      _
    $region11: #{tpu_custom_call.1} parent=1 // pred_check_branch
      %35 = sbr.rel (0) target = $region13
    $region12: #{tpu_custom_call.1} parent=1 // pred_region
      %s37 = ssub.s32 256, 256
      %38 = vsyncadd [#allocation6], %s37
      %s40 = sshll.u32 [#allocation7], 4
      %s41 = int_to_ptr.vmem [resolvable:$true] %s40
      %43 = dma.hbm_to_vmem [thread:$0]  %s2, 256, %s41, [#allocation6]
    $region13: #{tpu_custom_call.1} parent=1 // pred_fallthru
      _
    // Predicated region
    $region14: #{tpu_custom_call.1} parent=1 // pred_check
      _
    $region15: #{tpu_custom_call.1} parent=1 // pred_check_branch
      %45 = sbr.rel (0) target = $region17
    $region16: #{tpu_custom_call.1} parent=1 // pred_region
      %46 = dma.done [#allocation3], 256
    $region17: #{tpu_custom_call.1} parent=1 // pred_fallthru
      _
    // Predicated region
    $region18: #{tpu_custom_call.1} parent=1 // pred_check
      _
    $region19: #{tpu_custom_call.1} parent=1 // pred_check_branch
      %48 = sbr.rel (0) target = $region21
    $region20: #{tpu_custom_call.1} parent=1 // pred_region
      %49 = dma.done [#allocation6], 256
    $region21: #{tpu_custom_call.1} parent=1 // pred_fallthru
      _
    // Predicated region
    $region22: #{tpu_custom_call.1} parent=1 // pred_check
      _
    $region23: #{tpu_custom_call.1} parent=1 // pred_check_branch
      %51 = sbr.rel (0) target = $region25
    $region24: #{tpu_custom_call.1} parent=1 // pred_region
      %52 = dma.done [#allocation6], 256
    $region25: #{tpu_custom_call.1} parent=1 // pred_fallthru
      _
    %v53 = vld [vmem:[#allocation2] sm:$0xff]
    %v54 = vld [vmem:[#allocation2 + $0x8] sm:$0xff]
    %v55 = vunpack.c.l.bf16 %v53
    %v56 = vunpack.c.h.bf16 %v53
    %v57 = vunpack.c.l.bf16 %v54
    %v58 = vunpack.c.h.bf16 %v54
    %v59 = vsub.f32 0.0, %v55
    %v60 = vsub.f32 0.0, %v56
    %v61 = vsub.f32 0.0, %v57
    %v62 = vsub.f32 0.0, %v58
    %v63 = vmul.f32 %v59, 1.442695
    %v64 = vpow.pop %v63
    %v65 = vmul.f32 %v60, 1.442695
    %v66 = vpow.pop %v65
    %v67 = vmul.f32 %v61, 1.442695
    %v68 = vpow.pop %v67
    %v69 = vmul.f32 %v62, 1.442695
    %v70 = vpow.pop %v69
    %v71 = vadd.f32 %v64, 1.0
    %v72 = vadd.f32 %v66, 1.0
    %v73 = vadd.f32 %v68, 1.0
    %v74 = vadd.f32 %v70, 1.0
    %v75 = vrcp.pop %v71
    %v76 = vrcp.pop %v72
    %v77 = vrcp.pop %v73
    %v78 = vrcp.pop %v74
    %v79 = vpack.c.bf16 %v75, %v75
    %v80 = vpack.c.bf16 %v76, %v76
    %v81 = vpack.c.bf16 %v77, %v77
    %v82 = vpack.c.bf16 %v78, %v78
    %v87 = vunpack.c.l.b16 %v79
    %v88 = vunpack.c.l.b16 %v80
    %v89 = vunpack.c.l.b16 %v81
    %v90 = vunpack.c.l.b16 %v82
    %v91 = vpack.c.b16 %v88, %v87
    %v92 = vpack.c.b16 %v90, %v89
    %95 = vst [vmem:[#allocation8] sm:$0xff] %v91
    %96 = vst [vmem:[#allocation8 + $0x8] sm:$0xff] %v92
    %v97 = vld [vmem:[#allocation5] sm:$0xff]
    %v98 = vld [vmem:[#allocation5 + $0x8] sm:$0xff]
    %v99 = vunpack.c.l.bf16 %v97
    %v100 = vunpack.c.h.bf16 %v97
    %v101 = vunpack.c.l.bf16 %v98
    %v102 = vunpack.c.h.bf16 %v98
    %v103 = vld [vmem:[#allocation7] sm:$0xff]
    %v104 = vld [vmem:[#allocation7 + $0x8] sm:$0xff]
    %v107 = vcombine.high %v103, %v103
    %v108 = vcombine.high %v104, %v104
    %v111 = vcombine.low %v103, %v103
    %v112 = vcombine.low %v104, %v104
    %vm115 = vcmask 1043456
    %v116 = vsel %vm115, %v103, %v111
    %v117 = vsel %vm115, %v107, %v103
    %v118 = vsel %vm115, %v104, %v112
    %v119 = vsel %vm115, %v108, %v104
    %v120 = vrot.slane %v116, 6
    %v121 = vrot.slane %v117, 6
    %v122 = vrot.slane %v118, 6
    %v123 = vrot.slane %v119, 6
    %v124 = vsub.f32 %v120, %v116
    %v125 = vsub.f32 %v121, %v117
    %v126 = vsub.f32 %v122, %v118
    %v127 = vsub.f32 %v123, %v119
    %v128 = vand.u32 2147483647, %v124
    %v129 = vand.u32 2147483647, %v125
    %v130 = vand.u32 2147483647, %v126
    %v131 = vand.u32 2147483647, %v127
    %v132 = vadd.f32 %v128, 1.0
    %v133 = vadd.f32 %v129, 1.0
    %v134 = vadd.f32 %v130, 1.0
    %v135 = vadd.f32 %v131, 1.0
    %v136 = vadd.f32 %v120, %v116
    %v137 = vadd.f32 %v121, %v117
    %v138 = vadd.f32 %v122, %v118
    %v139 = vadd.f32 %v123, %v119
    %v140 = vmul.f32 %v136, 0.5
    %v141 = vmul.f32 %v137, 0.5
    %v142 = vmul.f32 %v138, 0.5
    %v143 = vmul.f32 %v139, 0.5
    %v144 = vlaneseq
    %v145 = vshrl.u32 %v144, 7
    %vm146 = vcmp.lt.s32.totalorder %v145, 0
    %v147 = vsub.s32 0, %v145
    %v148 = vsel %vm146, %v147, %v145
    %v149 = vshrl.u32 %v148, 2
    %v150 = vand.u32 %v148, 3
    %v151 = vsub.s32 0, %v150
    %v152 = vsel %vm146, %v151, %v150
    %vm153 = vcmp.ne.s32.totalorder %v152, 0
    %vm154 = vcmp.lt.s32.totalorder %v152, 0
    %vm155 = vmand %vm154, %vm153
    %v156 = vadd.s32 %v152, 4
    %v157 = vsel %vm155, %v156, %v152
    %vm158 = vcmp.lt.s32.totalorder %v157, 2
    %v159 = vrot.slane %v99, 6
    %v160 = vrot.slane %v100, 6
    %v161 = vrot.slane %v101, 6
    %v162 = vrot.slane %v102, 6
    %v163 = vsel %vm158, %v99, %v159
    %v164 = vsel %vm158, %v100, %v160
    %v165 = vsel %vm158, %v101, %v161
    %v166 = vsel %vm158, %v102, %v162
    %v167 = vrot.slane %v99, 2
    %v168 = vrot.slane %v100, 2
    %v169 = vrot.slane %v101, 2
    %v170 = vrot.slane %v102, 2
    %v171 = vsel %vm158, %v167, %v99
    %v172 = vsel %vm158, %v168, %v100
    %v173 = vsel %vm158, %v169, %v101
    %v174 = vsel %vm158, %v170, %v102
    %v175 = vsel %vm158, -0.5, 0.5
    %v176 = vmul.f32 %v163, %v132
    %v177 = vmul.f32 %v164, %v133
    %v178 = vmul.f32 %v165, %v134
    %v179 = vmul.f32 %v166, %v135
    %v180 = vadd.f32 %v176, %v140
    %v181 = vadd.f32 %v177, %v141
    %v182 = vadd.f32 %v178, %v142
    %v183 = vadd.f32 %v179, %v143
    %v184 = vmul.f32 %v171, 1.442695
    %v185 = vpow.pop %v184
    %v186 = vmul.f32 %v172, 1.442695
    %v187 = vpow.pop %v186
    %v188 = vmul.f32 %v173, 1.442695
    %v189 = vpow.pop %v188
    %v190 = vmul.f32 %v174, 1.442695
    %v191 = vpow.pop %v190
    %v192 = vmul.f32 %v185, %v132
    %v193 = vmul.f32 %v187, %v133
    %v194 = vmul.f32 %v189, %v134
    %v195 = vmul.f32 %v191, %v135
    %v196 = vsub.f32 %v192, 1.0
    %v197 = vsub.f32 %v193, 1.0
    %v198 = vsub.f32 %v194, 1.0
    %v199 = vsub.f32 %v195, 1.0
    %v200 = vmul.f32 %v175, %v196
    %v201 = vmul.f32 %v175, %v197
    %v202 = vmul.f32 %v175, %v198
    %v203 = vmul.f32 %v175, %v199
    %v204 = vadd.f32 %v180, %v200
    %v205 = vadd.f32 %v181, %v201
    %v206 = vadd.f32 %v182, %v202
    %v207 = vadd.f32 %v183, %v203
    %208 = vst [vmem:[#allocation9] sm:$0xff] %v204
    %209 = vst [vmem:[#allocation9 + $0x8] sm:$0xff] %v205
    %210 = vst [vmem:[#allocation9 + $0x10] sm:$0xff] %v206
    %211 = vst [vmem:[#allocation9 + $0x18] sm:$0xff] %v207
    // Predicated region
    $region26: #{tpu_custom_call.1} parent=1 // pred_check
      _
    $region27: #{tpu_custom_call.1} parent=1 // pred_check_branch
      %213 = sbr.rel (0) target = $region29
    $region28: #{tpu_custom_call.1} parent=1 // pred_region
      %s215 = ssub.s32 256, 256
      %216 = vsyncadd [#allocation4], %s215
      %s218 = sshll.u32 [#allocation8], 4
      %s219 = int_to_ptr.vmem [resolvable:$true] %s218
      %221 = dma.vmem_to_hbm [thread:$0]  %s219, 256, %s3, [#allocation4]
    $region29: #{tpu_custom_call.1} parent=1 // pred_fallthru
      _
    // Predicated region
    $region30: #{tpu_custom_call.1} parent=1 // pred_check
      _
    $region31: #{tpu_custom_call.1} parent=1 // pred_check_branch
      %223 = sbr.rel (0) target = $region33
    $region32: #{tpu_custom_call.1} parent=1 // pred_region
      %s225 = ssub.s32 512, 512
      %226 = vsyncadd [#allocation10], %s225
      %s228 = sshll.u32 [#allocation9], 4
      %s229 = int_to_ptr.vmem [resolvable:$true] %s228
      %231 = dma.vmem_to_hbm [thread:$0]  %s229, 512, %s4, [#allocation10]
    $region33: #{tpu_custom_call.1} parent=1 // pred_fallthru
      _
    // Predicated region
    $region34: #{tpu_custom_call.1} parent=1 // pred_check
      _
    $region35: #{tpu_custom_call.1} parent=1 // pred_check_branch
      %233 = sbr.rel (0) target = $region37
    $region36: #{tpu_custom_call.1} parent=1 // pred_region
      %234 = dma.done [#allocation4], 256
    $region37: #{tpu_custom_call.1} parent=1 // pred_fallthru
      _
    // Predicated region
    $region38: #{tpu_custom_call.1} parent=1 // pred_check
      _
    $region39: #{tpu_custom_call.1} parent=1 // pred_check_branch
      %236 = sbr.rel (0) target = $region41
    $region40: #{tpu_custom_call.1} parent=1 // pred_region
      %237 = dma.done [#allocation10], 512
    $region41: #{tpu_custom_call.1} parent=1 // pred_fallthru
      _
    %238 = vsyncpa [#allocation3], 1
    %239 = vsyncpa [#allocation6], 1
    %240 = vsyncpa [#allocation4], 1
    %241 = vsyncpa [#allocation10], 1

</llo_original>
